<compile_context>
chip_gen: v7x
topology: tpu7x:2x2x1
jax: 0.10.0
libtpu: 0.0.40
codegen_flags: <defaults>
</compile_context>

<pallas_src>
import functools
import math

import jax
import jax.numpy as jnp
from jax.experimental import pallas as pl
from jax.experimental.pallas import tpu as pltpu


def _layernorm_kernel(x_ref, gamma_ref, beta_ref, o_ref, *, eps, features):
    x = x_ref[...].astype(jnp.float32)          # (tm, F)
    gamma = gamma_ref[...]                      # (1, F) f32
    beta = beta_ref[...]                        # (1, F) f32

    mean = jnp.mean(x, axis=-1, keepdims=True)  # (tm, 1)
    diff = x - mean
    # torch.std: unbiased estimator (divide by N-1)
    denom = max(features - 1, 1)
    var = jnp.sum(diff * diff, axis=-1, keepdims=True) / denom
    std = jnp.sqrt(var)
    # Per-row reciprocal (tm,1): one divide per row instead of F per row.
    inv = pl.reciprocal(std + eps, approx=False)
    out = diff * (gamma * inv) + beta
    o_ref[...] = out.astype(o_ref.dtype)


def _round_up(x, m):
    return ((x + m - 1) // m) * m


def layer_norm_pallas(x, gamma, beta, eps=1e-6, target_tile_bytes=4 << 20):
    """x: (..., features). gamma, beta: (features,). Normalizes last axis."""
    orig_shape = x.shape
    features = orig_shape[-1]
    rows = int(math.prod(orig_shape[:-1])) if len(orig_shape) > 1 else 1
    x2 = x.reshape(rows, features)

    # gamma/beta as (1, F) f32, cast once here (not per grid step).
    gamma2 = gamma.reshape(1, features).astype(jnp.float32)
    beta2 = beta.reshape(1, features).astype(jnp.float32)

    # --- Tile selection: big, bandwidth-friendly row tiles ------------------
    # Sublane alignment: 8 for 32-bit, 16 for 16-bit packed dtypes.
    itemsize = jnp.dtype(x2.dtype).itemsize
    row_align = 16 if itemsize <= 2 else 8
    # Target ~4 MiB of f32 working data per tile (safe on v5e/v6e/v7x VMEM).
    bytes_per_row_f32 = features * 4
    row_block = max(row_align, (target_tile_bytes // bytes_per_row_f32))
    row_block = (row_block // row_align) * row_align
    # Don't make the block bigger than the (aligned) data itself.
    row_block = min(row_block, _round_up(rows, row_align))
    row_block = max(row_block, row_align)

    # Pad rows so the grid divides evenly; pad rows produce finite garbage
    # (beta) and are sliced off below.
    padded_rows = _round_up(rows, row_block)
    if padded_rows != rows:
        x2 = jnp.pad(x2, ((0, padded_rows - rows), (0, 0)))

    grid = (padded_rows // row_block,)

    # VMEM budget: double-buffered input + output tiles, params, + headroom.
    tile_in_bytes = row_block * features * itemsize
    tile_out_bytes = row_block * features * itemsize
    vmem_limit = int(2 * tile_in_bytes + 2 * tile_out_bytes
                     + 4 * features * 4 + (16 << 20))
    vmem_limit = min(vmem_limit, 100 << 20)

    kernel = functools.partial(_layernorm_kernel, eps=float(eps),
                               features=features)

    # NOTE: for real workloads keep `features` a multiple of 128 so stores are
    # lane-dense (unmasked vst); small hidden sizes waste lane bandwidth.
    out2 = pl.pallas_call(
        kernel,
        out_shape=jax.ShapeDtypeStruct((padded_rows, features), x.dtype),
        grid_spec=pltpu.PrefetchScalarGridSpec(
            num_scalar_prefetch=0,
            grid=grid,
            in_specs=[
                pl.BlockSpec((row_block, features), lambda i: (i, 0)),
                pl.BlockSpec((1, features), lambda i: (0, 0)),
                pl.BlockSpec((1, features), lambda i: (0, 0)),
            ],
            out_specs=pl.BlockSpec((row_block, features), lambda i: (i, 0)),
        ),
        compiler_params=pltpu.CompilerParams(
            dimension_semantics=("parallel",),
            vmem_limit_bytes=vmem_limit,
        ),
    )(x2, gamma2, beta2)

    if padded_rows != rows:
        out2 = out2[:rows]
    return out2.reshape(orig_shape)


if __name__ == "__main__":
    key = jax.random.PRNGKey(0)
    batch, seq, hidden = 2, 8, 32

    x = jax.random.normal(key, (batch, seq, hidden), dtype=jnp.float32)

    # deterministic parameter init matching nn.Parameter(torch.ones/zeros)
    gamma = jnp.ones((hidden,), dtype=jnp.float32)
    beta = jnp.zeros((hidden,), dtype=jnp.float32)
    eps = 1e-6

    out = layer_norm_pallas(x, gamma, beta, eps)
    out = jax.block_until_ready(out)

    # reference check (plain JAX, same unbiased-std formula as torch)
    mean = jnp.mean(x, axis=-1, keepdims=True)
    std = jnp.std(x, axis=-1, keepdims=True, ddof=1)
    ref = gamma * (x - mean) / (std + eps) + beta
    assert jnp.allclose(out, ref, atol=1e-5, rtol=1e-5), "mismatch vs reference"

    print("KERNEL_OK")
</pallas_src>

<mosaic_0001>
module attributes {stable_mosaic.version = 11 : i64} {
  func.func @_layernorm_kernel(%arg0: i32, %arg1: memref<16x32xf32, #tpu.memory_space<vmem>>, %arg2: memref<1x32xf32, #tpu.memory_space<vmem>>, %arg3: memref<1x32xf32, #tpu.memory_space<vmem>>, %arg4: memref<16x32xf32, #tpu.memory_space<vmem>>) attributes {dimension_semantics = [#tpu.dimension_semantics<parallel>], iteration_bounds = array<i64: 1>, scalar_prefetch = 0 : i64, scratch_operands = 0 : i64, tpu.core_type = #tpu.core_type<tc>, window_params = [{transform_indices = @transform_0, window_bounds = array<i64: 16, 32>}, {pipeline_mode = #tpu.pipeline_mode<synchronous>, transform_indices = @transform_1, window_bounds = array<i64: 1, 32>}, {pipeline_mode = #tpu.pipeline_mode<synchronous>, transform_indices = @transform_2, window_bounds = array<i64: 1, 32>}, {transform_indices = @transform_3, window_bounds = array<i64: 16, 32>}]} {
    %c0 = arith.constant 0 : index
    %c0_0 = arith.constant 0 : index
    %0 = vector.load %arg1[%c0, %c0_0] : memref<16x32xf32, #tpu.memory_space<vmem>>, vector<16x32xf32>
    %c0_1 = arith.constant 0 : index
    %c0_2 = arith.constant 0 : index
    %1 = vector.load %arg2[%c0_1, %c0_2] : memref<1x32xf32, #tpu.memory_space<vmem>>, vector<1x32xf32>
    %c0_3 = arith.constant 0 : index
    %c0_4 = arith.constant 0 : index
    %2 = vector.load %arg3[%c0_3, %c0_4] : memref<1x32xf32, #tpu.memory_space<vmem>>, vector<1x32xf32>
    %cst = arith.constant dense<0.000000e+00> : vector<16xf32>
    %3 = vector.multi_reduction <add>, %0, %cst [1] : vector<16x32xf32> to vector<16xf32>
    %4 = vector.shape_cast %3 : vector<16xf32> to vector<16x1xf32>
    %cst_5 = arith.constant 3.200000e+01 : f32
    %5 = vector.broadcast %cst_5 : f32 to vector<16x1xf32>
    %6 = arith.divf %4, %5 : vector<16x1xf32>
    %7 = vector.broadcast %6 : vector<16x1xf32> to vector<16x32xf32>
    %8 = arith.subf %0, %7 : vector<16x32xf32>
    %9 = arith.mulf %8, %8 : vector<16x32xf32>
    %cst_6 = arith.constant dense<0.000000e+00> : vector<16xf32>
    %10 = vector.multi_reduction <add>, %9, %cst_6 [1] : vector<16x32xf32> to vector<16xf32>
    %11 = vector.shape_cast %10 : vector<16xf32> to vector<16x1xf32>
    %cst_7 = arith.constant 3.100000e+01 : f32
    %12 = vector.broadcast %cst_7 : f32 to vector<16x1xf32>
    %13 = arith.divf %11, %12 : vector<16x1xf32>
    %14 = math.sqrt %13 : vector<16x1xf32>
    %cst_8 = arith.constant 9.99999997E-7 : f32
    %15 = vector.broadcast %cst_8 : f32 to vector<16x1xf32>
    %16 = arith.addf %14, %15 : vector<16x1xf32>
    %17 = tpu.reciprocal %16 : vector<16x1xf32> -> vector<16x1xf32>
    %18 = vector.broadcast %1 : vector<1x32xf32> to vector<16x32xf32>
    %19 = vector.broadcast %17 : vector<16x1xf32> to vector<16x32xf32>
    %20 = arith.mulf %18, %19 : vector<16x32xf32>
    %21 = arith.mulf %8, %20 : vector<16x32xf32>
    %22 = vector.broadcast %2 : vector<1x32xf32> to vector<16x32xf32>
    %23 = arith.addf %21, %22 : vector<16x32xf32>
    %c0_9 = arith.constant 0 : index
    %c0_10 = arith.constant 0 : index
    %24 = vector.load %arg4[%c0_9, %c0_10] : memref<16x32xf32, #tpu.memory_space<vmem>>, vector<16x32xf32>
    tpu.vector_store %arg4[%c0_9, %c0_10], %23 {strides = array<i32>} : memref<16x32xf32, #tpu.memory_space<vmem>>, vector<16x32xf32>,
    return
  }
  func.func @transform_0(%arg0: i32) -> (i32, i32) {
    %c0_i32 = arith.constant 0 : i32
    %c0_i32_0 = arith.constant 0 : i32
    return %arg0, %c0_i32 : i32, i32
  }
  func.func @transform_1(%arg0: i32) -> (i32, i32) {
    %c0_i32 = arith.constant 0 : i32
    %c0_i32_0 = arith.constant 0 : i32
    %c0_i32_1 = arith.constant 0 : i32
    return %c0_i32, %c0_i32_0 : i32, i32
  }
  func.func @transform_2(%arg0: i32) -> (i32, i32) {
    %c0_i32 = arith.constant 0 : i32
    %c0_i32_0 = arith.constant 0 : i32
    %c0_i32_1 = arith.constant 0 : i32
    return %c0_i32, %c0_i32_0 : i32, i32
  }
  func.func @transform_3(%arg0: i32) -> (i32, i32) {
    %c0_i32 = arith.constant 0 : i32
    %c0_i32_0 = arith.constant 0 : i32
    return %arg0, %c0_i32 : i32, i32
  }
}

</mosaic_0001>

<llo_original>
// kernel: tpu_custom_call.1
$region0: #{tpu_custom_call.1}
  #allocation0 [shape = 'u32[]', space=smem, size = 0x4, offset = 0x4, fixed_abs, tag = 'smem constant byte address 0x4 - core index']
  #allocation1 [shape = 'u32[144,128]{1,0:T(1,128)}', space=vmem, size = 0x12000, scoped, tag = 'internal scratch']
  %s0 = inlined_call_operand.hbm [shape: f32[16,32], index: 0, kind: input, shape index: {}]
  %s1 = inlined_call_operand.vmem [shape: f32[1,32], index: 1, kind: input, shape index: {}]
  %s2 = inlined_call_operand.vmem [shape: f32[1,32], index: 2, kind: input, shape index: {}]
  %s3 = inlined_call_operand.hbm [shape: f32[16,32], index: 3, kind: output, shape index: {}]
  %s4 = sld [smem:[#allocation0]]
  $region26: #{tpu_custom_call.1} parent=0
    _
  %s6 = ssub.s32 1, %s4
  %s7 = scalar_select 0, %s6, %s4
  $region1: #{tpu_custom_call.1} parent=0
    #allocation2 [shape = 'u8[8192]{0}', space=vmem, size = 0x2000, scoped, tag = 'input window, operand 0, single buffered']
    #allocation3 [shape = 's32[1]{0}', space=sflag, size = 0x4, scoped, tag = 'scoped memory for tpu_custom_call.1']
    #allocation4 [shape = 's32[1]{0}', space=sflag, size = 0x4, scoped, tag = 'scoped memory for tpu_custom_call.1']
    #allocation5 [shape = 'u8[8192]{0}', space=vmem, size = 0x2000, scoped, tag = 'output window, operand 0, single buffered']
    %8 = vsyncpa [#allocation3], 0
    %9 = vsyncpa [#allocation4], 0
    // Predicated region
    $region2: #{tpu_custom_call.1} parent=1 // pred_check
      _
    $region3: #{tpu_custom_call.1} parent=1 // pred_check_branch
      %11 = sbr.rel (0) target = $region5
    $region4: #{tpu_custom_call.1} parent=1 // pred_region
      %s13 = ssub.s32 256, 256
      %14 = vsyncadd [#allocation3], %s13
      %s15 = sshll.u32 [#allocation2], 4
      %s16 = int_to_ptr.vmem [resolvable:$true] %s15
      %21 = dma.hbm_to_vmem [thread:$0]  %s0, 256, %s16, [#allocation3], 128, 128, 8
    $region5: #{tpu_custom_call.1} parent=1 // pred_fallthru
      _
    // Predicated region
    $region6: #{tpu_custom_call.1} parent=1 // pred_check
      _
    $region7: #{tpu_custom_call.1} parent=1 // pred_check_branch
      %23 = sbr.rel (0) target = $region9
    $region8: #{tpu_custom_call.1} parent=1 // pred_region
      _
    $region9: #{tpu_custom_call.1} parent=1 // pred_fallthru
      _
    // Predicated region
    $region10: #{tpu_custom_call.1} parent=1 // pred_check
      _
    $region11: #{tpu_custom_call.1} parent=1 // pred_check_branch
      %25 = sbr.rel (0) target = $region13
    $region12: #{tpu_custom_call.1} parent=1 // pred_region
      _
    $region13: #{tpu_custom_call.1} parent=1 // pred_fallthru
      _
    // Predicated region
    $region14: #{tpu_custom_call.1} parent=1 // pred_check
      _
    $region15: #{tpu_custom_call.1} parent=1 // pred_check_branch
      %27 = sbr.rel (0) target = $region17
    $region16: #{tpu_custom_call.1} parent=1 // pred_region
      %28 = dma.done [#allocation3], 256
    $region17: #{tpu_custom_call.1} parent=1 // pred_fallthru
      _
    %v29 = vld [vmem:[#allocation2] sm:$0xff]
    %v30 = vld [vmem:[#allocation2 + $0x8] sm:$0xff]
    %v31 = vld [vmem:[%s1] sm:$0x1]
    %v32 = vld [vmem:[%s2] sm:$0x1]
    %vm33 = vcmask 261120
    %v34 = vsel %vm33, %v29, 0.0
    %35 = vadd.xlane.f32.xlu0 %v34
    %v36 = vpop.xlane.xlu0 %35
    %v37 = vsel %vm33, %v30, 0.0
    %38 = vadd.xlane.f32.xlu0 %v37
    %v39 = vpop.xlane.xlu0 %38
    %v40 = vrcp.pop 32.0
    %v41 = vmul.f32 %v36, %v40
    %v42 = vmul.f32 %v39, %v40
    %v43 = vsub.f32 %v29, %v41
    %v44 = vsub.f32 %v30, %v42
    %v45 = vmul.f32 %v43, %v43
    %v46 = vmul.f32 %v44, %v44
    %v47 = vsel %vm33, %v45, 0.0
    %48 = vadd.xlane.f32.xlu0 %v47
    %v49 = vpop.xlane.xlu0 %48
    %v50 = vsel %vm33, %v46, 0.0
    %51 = vadd.xlane.f32.xlu0 %v50
    %v52 = vpop.xlane.xlu0 %51
    %v53 = vrcp.pop 31.0
    %v54 = vmul.f32 %v49, %v53
    %v55 = vmul.f32 %v52, %v53
    %v56 = vrsqrt.pop %v54
    %v57 = vmul.f32 %v54, %v56
    %vm58 = vcmp.eq.f32.partialorder %v54, inf
    %v59 = vsel %vm58, %v54, %v57
    %vm60 = vcmp.eq.f32.partialorder %v54, 0.0
    %v61 = vand.u32 %v54, 2147483648
    %v62 = vsel %vm60, %v61, %v59
    %v63 = vrsqrt.pop %v55
    %v64 = vmul.f32 %v55, %v63
    %vm65 = vcmp.eq.f32.partialorder %v55, inf
    %v66 = vsel %vm65, %v55, %v64
    %vm67 = vcmp.eq.f32.partialorder %v55, 0.0
    %v68 = vand.u32 %v55, 2147483648
    %v69 = vsel %vm67, %v68, %v66
    %v70 = vadd.f32 %v62, 1e-06
    %v71 = vadd.f32 %v69, 1e-06
    %v72 = vrcp.pop %v70
    %v73 = vrcp.pop %v71
    %v75 = vlaneseq
    %v76 = vshrl.u32 %v75, 7
    %v77 = vsub.s32 0, %v76
    %v78 = vrot.slane %v31, %v77
    %v80 = vmul.f32 %v78, %v72
    %v81 = vmul.f32 %v78, %v73
    %v82 = vmul.f32 %v43, %v80
    %v83 = vmul.f32 %v44, %v81
    %v85 = vlaneseq
    %v86 = vshrl.u32 %v85, 7
    %v87 = vsub.s32 0, %v86
    %v88 = vrot.slane %v32, %v87
    %v90 = vadd.f32 %v82, %v88
    %v91 = vadd.f32 %v83, %v88
    %92 = vst.msk [vmem:[#allocation5] sm:$0xff] %vm33, %v90
    %93 = vst.msk [vmem:[#allocation5 + $0x8] sm:$0xff] %vm33, %v91
    // Predicated region
    $region18: #{tpu_custom_call.1} parent=1 // pred_check
      _
    $region19: #{tpu_custom_call.1} parent=1 // pred_check_branch
      %95 = sbr.rel (0) target = $region21
    $region20: #{tpu_custom_call.1} parent=1 // pred_region
      %s97 = ssub.s32 256, 256
      %98 = vsyncadd [#allocation4], %s97
      %s99 = sshll.u32 [#allocation5], 4
      %s100 = int_to_ptr.vmem [resolvable:$true] %s99
      %105 = dma.vmem_to_hbm [thread:$0]  %s100, 256, %s3, [#allocation4], 128, 128, 8
    $region21: #{tpu_custom_call.1} parent=1 // pred_fallthru
      _
    // Predicated region
    $region22: #{tpu_custom_call.1} parent=1 // pred_check
      _
    $region23: #{tpu_custom_call.1} parent=1 // pred_check_branch
      %107 = sbr.rel (0) target = $region25
    $region24: #{tpu_custom_call.1} parent=1 // pred_region
      %108 = dma.done [#allocation4], 256
    $region25: #{tpu_custom_call.1} parent=1 // pred_fallthru
      _
    %109 = vsyncpa [#allocation3], 1
    %110 = vsyncpa [#allocation4], 1

</llo_original>
